<compile_context>
chip_gen: v5e
topology: v5e:2x2
jax: 0.10.0
libtpu: 0.0.40
codegen_flags: <defaults>
</compile_context>

<pallas_src>
import functools

import jax
import jax.numpy as jnp
from jax import lax
from jax.experimental import pallas as pl
from jax.experimental.pallas import tpu as pltpu

SCALE = 20.0        # default scale of MultipleNegativesRankingLoss
EPS = 1e-12         # eps of torch.nn.functional.normalize used by util.cos_sim
_MASK_BIAS = -1e30  # additive bias that kills padded candidate columns


def _round_up(x: int, m: int) -> int:
    return (x + m - 1) // m * m


def _tpu_two_tensorcores() -> bool:
    """Chips whose Pallas 'parallel' grid axis is sharded across 2 TensorCores."""
    try:
        kind = jax.devices()[0].device_kind.lower()
    except Exception:
        return False
    return any(tag in kind for tag in ("v4", "v5p", "v7"))


def _vmem_budget_bytes() -> int:
    try:
        kind = jax.devices()[0].device_kind.lower()
        if "v7" in kind:
            return 48 * 1024 * 1024   # v7x: 64 MiB physical VMEM per TensorCore
    except Exception:
        pass
    return 96 * 1024 * 1024           # v5e / v6e: 128 MiB physical VMEM


def _mnrl_lse_kernel(a_ref, c_ref, cs_ref, out_ref, m_ref, l_ref, *, mask_needed):
    """One (B-tile, C-tile) grid step of the streaming logsumexp over candidates."""
    k = pl.program_id(1)

    @pl.when(k == 0)
    def _init():
        m_ref[...] = jnp.full(m_ref.shape, -jnp.inf, dtype=m_ref.dtype)
        l_ref[...] = jnp.zeros(l_ref.shape, dtype=l_ref.dtype)

    # Raw (unnormalized) candidate tile straight into the MXU; anchors arrive
    # already normalized and pre-scaled by `scale` from the wrapper. Contract
    # directly on the lane-major D axis (no transpose).
    s = lax.dot_general(a_ref[...], c_ref[...],
                        dimension_numbers=(((1,), (1,)), ((), ())),
                        preferred_element_type=jnp.float32)            # (Tb, Tc)

    # Column rescale by the precomputed per-candidate inverse norm.
    s = s * cs_ref[0:1, :]
    if mask_needed:
        s = s + cs_ref[1:2, :]   # {0, -1e30} additive bias for padded columns

    # Online (streaming) logsumexp update in f32.
    m_prev = m_ref[...]
    m_new = jnp.maximum(m_prev, jnp.max(s, axis=-1, keepdims=True))
    l_ref[...] = (l_ref[...] * jnp.exp(m_prev - m_new)
                  + jnp.sum(jnp.exp(s - m_new), axis=-1, keepdims=True))
    m_ref[...] = m_new

    @pl.when(k == pl.num_programs(1) - 1)
    def _finalize():
        out_ref[...] = m_ref[...] + jnp.log(l_ref[...])


def multiple_negatives_ranking_loss(anchors: jax.Array, candidates: jax.Array,
                                    *, scale: float = SCALE,
                                    block_b: int = 512, block_c: int = 1024) -> jax.Array:
    """anchors: (B, D); candidates: (C, D) with C >= B (positives first). Scalar f32 loss."""
    B, D = anchors.shape
    C, D2 = candidates.shape
    assert D == D2, "anchor / candidate hidden sizes must match"
    assert C >= B, "candidates must contain the positives as their first B rows"

    dtype = anchors.dtype                 # MXU / DMA stream dtype
    itemsize = jnp.dtype(dtype).itemsize
    sub = {4: 8, 2: 16, 1: 32}.get(itemsize, 8)   # dtype-aware sublane packing
    d_pad = _round_up(D, 128)

    # --- wrapper-side precompute (O((B + C) * D) in XLA, negligible vs the kernel) ---
    a32 = anchors.astype(jnp.float32)
    a_inv = lax.rsqrt(jnp.maximum(jnp.sum(a32 * a32, axis=-1, keepdims=True), EPS * EPS))
    a_scaled32 = a32 * (scale * a_inv)                                   # scale * a_normalized
    c32 = candidates.astype(jnp.float32)
    c_inv = lax.rsqrt(jnp.maximum(jnp.sum(c32 * c32, axis=-1), EPS * EPS))  # (C,)
    # Diagonal (positive) scores: scores[i, i] = scale * <a_n_i, c_n_i>, i < B (f32).
    diag = jnp.sum(a_scaled32 * (c32[:B] * c_inv[:B, None]), axis=-1)       # (B,)

    # --- tile selection (VMEM-budget aware, dtype-aware sublanes, megacore split) ---
    tb = min(block_b, _round_up(B, sub))
    if _tpu_two_tensorcores():
        # Ensure >=2 row blocks when possible so both TensorCores get "parallel" work.
        half = max(sub, _round_up((B + 1) // 2, sub))
        tb = min(tb, half)
    tc = min(block_c, _round_up(C, 128))

    budget = _vmem_budget_bytes()

    def vmem_estimate(tb_, tc_):
        return (2 * tb_ * d_pad * itemsize      # anchor tile (double buffered)
                + 2 * tc_ * d_pad * itemsize    # candidate tile (double buffered)
                + 2 * 8 * tc_ * 4               # column-scale rows (double buffered)
                + 4 * tb_ * 4                   # output block + m/l scratch
                + 4 * tb_ * tc_ * 4)            # live (Tb, Tc) f32 temporaries

    while vmem_estimate(tb, tc) > budget and (tb > 256 or tc > 256):
        if tc >= tb and tc > 256:
            tc = max(128, _round_up(tc // 2, 128))
        else:
            tb = max(sub, _round_up(tb // 2, sub))

    b_pad = _round_up(B, tb)
    c_pad = _round_up(C, tc)
    nb, nc = b_pad // tb, c_pad // tc
    mask_needed = c_pad != C
    vmem_limit = int(min(127 * 1024 * 1024,
                         max(32 * 1024 * 1024, vmem_estimate(tb, tc) + 8 * 1024 * 1024)))

    # --- padded kernel inputs ---
    # TODO(synk): optionally cast f32 embeddings to bf16 here for the MXU/DMA fast
    # path on v5e (trades ~1e-2 logit error at scale=20 for 2-4x MXU throughput).
    a_p = a_scaled32.astype(dtype)
    if (b_pad, d_pad) != (B, D):
        a_p = jnp.pad(a_p, ((0, b_pad - B), (0, d_pad - D)))
    c_p = candidates.astype(dtype)
    if (c_pad, d_pad) != (C, D):
        c_p = jnp.pad(c_p, ((0, c_pad - C), (0, d_pad - D)))

    col = jnp.arange(c_pad, dtype=jnp.int32)
    inv_row = jnp.pad(c_inv, (0, c_pad - C))                              # 0 on padded cols
    bias_row = jnp.where(col < C, 0.0, _MASK_BIAS).astype(jnp.float32)
    colscale = (jnp.zeros((8, c_pad), jnp.float32)
                .at[0].set(inv_row).at[1].set(bias_row))                  # 8 rows: aligned

    kernel = functools.partial(_mnrl_lse_kernel, mask_needed=mask_needed)

    grid_spec = pltpu.PrefetchScalarGridSpec(
        num_scalar_prefetch=0,
        grid=(nb, nc),
        in_specs=[
            pl.BlockSpec((tb, d_pad), lambda i, k: (i, 0)),   # pre-scaled anchor tile
            pl.BlockSpec((tc, d_pad), lambda i, k: (k, 0)),   # raw candidate tile (streamed)
            pl.BlockSpec((8, tc), lambda i, k: (0, k)),       # inv-norm + mask-bias rows
        ],
        out_specs=pl.BlockSpec((tb, 1), lambda i, k: (i, 0)),
        scratch_shapes=[
            pltpu.VMEM((tb, 1), jnp.float32),                 # running max
            pltpu.VMEM((tb, 1), jnp.float32),                 # running sum of exp
        ],
    )

    cost = pl.CostEstimate(
        flops=int(2 * b_pad * c_pad * d_pad + 5 * b_pad * c_pad),
        transcendentals=int(b_pad * c_pad + 2 * b_pad * nc),
        bytes_accessed=int((b_pad * d_pad + nb * c_pad * d_pad) * itemsize
                           + nb * 8 * c_pad * 4 + b_pad * 4),
    )

    per_row_lse = pl.pallas_call(
        kernel,
        grid_spec=grid_spec,
        out_shape=jax.ShapeDtypeStruct((b_pad, 1), jnp.float32),
        compiler_params=pltpu.CompilerParams(
            dimension_semantics=("parallel", "arbitrary"),
            vmem_limit_bytes=vmem_limit),
        cost_estimate=cost,
    )(a_p, c_p, colscale)

    # CrossEntropyLoss with labels = arange(B), mean reduction (padded rows dropped).
    return jnp.mean(per_row_lse[:B, 0] - diag)


def _reference_loss(anchors, candidates):
    a = anchors.astype(jnp.float32)
    c = candidates.astype(jnp.float32)
    a_n = a / jnp.maximum(jnp.linalg.norm(a, axis=-1, keepdims=True), EPS)
    c_n = c / jnp.maximum(jnp.linalg.norm(c, axis=-1, keepdims=True), EPS)
    scores = SCALE * (a_n @ c_n.T)
    labels = jnp.arange(scores.shape[0])
    logp = jax.nn.log_softmax(scores, axis=-1)
    return -jnp.mean(logp[jnp.arange(scores.shape[0]), labels])


if __name__ == "__main__":
    # TODO(synk): the SentenceTransformer encoder producing the embeddings is out of
    # scope (and the torch.distributed all-gather branch); synthetic embeddings here.
    key = jax.random.PRNGKey(0)
    k_a, k_p, k_n = jax.random.split(key, 3)

    B, D = 8, 32          # batch of (anchor, positive, hard-negative) triplets
    anchors = jax.random.normal(k_a, (B, D), dtype=jnp.float32)
    positives = jax.random.normal(k_p, (B, D), dtype=jnp.float32)
    hard_negatives = jax.random.normal(k_n, (B, D), dtype=jnp.float32)

    # candidates = cat(reps[1:]) -> positives then hard negatives, shape (2B, D)
    candidates = jnp.concatenate([positives, hard_negatives], axis=0)

    # f32 embeddings.
    loss = multiple_negatives_ranking_loss(anchors, candidates)
    jax.block_until_ready(loss)
    ref = _reference_loss(anchors, candidates)
    assert jnp.allclose(loss, ref, rtol=1e-3, atol=1e-3), (loss, ref)

    # bf16 embeddings: raw bf16 candidate tiles hit the full-rate bf16 MXU path
    # (column rescale + logsumexp stay f32).
    a_bf = anchors.astype(jnp.bfloat16)
    c_bf = candidates.astype(jnp.bfloat16)
    loss_bf16 = multiple_negatives_ranking_loss(a_bf, c_bf)
    jax.block_until_ready(loss_bf16)
    ref_bf16 = _reference_loss(a_bf.astype(jnp.float32), c_bf.astype(jnp.float32))
    assert jnp.isfinite(loss_bf16) and jnp.abs(loss_bf16 - ref_bf16) < 0.15, (loss_bf16, ref_bf16)

    print("KERNEL_OK")
</pallas_src>

<mosaic_0001>
module attributes {stable_mosaic.version = 11 : i64} {
  func.func @_mnrl_lse_kernel(%arg0: i32, %arg1: i32, %arg2: memref<8x128xf32, #tpu.memory_space<vmem>>, %arg3: memref<128x128xf32, #tpu.memory_space<vmem>>, %arg4: memref<8x128xf32, #tpu.memory_space<vmem>>, %arg5: memref<8x1xf32, #tpu.memory_space<vmem>>, %arg6: memref<8x1xf32, #tpu.memory_space<vmem>>, %arg7: memref<8x1xf32, #tpu.memory_space<vmem>>) attributes {dimension_semantics = [#tpu.dimension_semantics<parallel>, #tpu.dimension_semantics<arbitrary>], iteration_bounds = array<i64: 1, 1>, scalar_prefetch = 0 : i64, scratch_operands = 2 : i64, tpu.core_type = #tpu.core_type<tc>, window_params = [{transform_indices = @transform_0, window_bounds = array<i64: 8, 128>}, {transform_indices = @transform_1, window_bounds = array<i64: 128, 128>}, {transform_indices = @transform_2, window_bounds = array<i64: 8, 128>}, {transform_indices = @transform_3, window_bounds = array<i64: 8, 1>}]} {
    %c0_i32 = arith.constant 0 : i32
    %0 = arith.cmpi eq, %arg1, %c0_i32 : i32
    %1 = arith.extui %0 : i1 to i32
    %c0_i32_0 = arith.constant 0 : i32
    %2 = arith.cmpi ne, %1, %c0_i32_0 : i32
    scf.if %2 {
      %cst_19 = arith.constant 0xFF800000 : f32
      %31 = vector.broadcast %cst_19 : f32 to vector<8x1xf32>
      %c0_20 = arith.constant 0 : index
      %c0_21 = arith.constant 0 : index
      %32 = vector.load %arg6[%c0_20, %c0_21] : memref<8x1xf32, #tpu.memory_space<vmem>>, vector<8x1xf32>
      tpu.vector_store %arg6[%c0_20, %c0_21], %31 {strides = array<i32>} : memref<8x1xf32, #tpu.memory_space<vmem>>, vector<8x1xf32>,
      %cst_22 = arith.constant 0.000000e+00 : f32
      %33 = vector.broadcast %cst_22 : f32 to vector<8x1xf32>
      %c0_23 = arith.constant 0 : index
      %c0_24 = arith.constant 0 : index
      %34 = vector.load %arg7[%c0_23, %c0_24] : memref<8x1xf32, #tpu.memory_space<vmem>>, vector<8x1xf32>
      tpu.vector_store %arg7[%c0_23, %c0_24], %33 {strides = array<i32>} : memref<8x1xf32, #tpu.memory_space<vmem>>, vector<8x1xf32>,
    } else {
    }
    %c0 = arith.constant 0 : index
    %c0_1 = arith.constant 0 : index
    %3 = vector.load %arg2[%c0, %c0_1] : memref<8x128xf32, #tpu.memory_space<vmem>>, vector<8x128xf32>
    %c0_2 = arith.constant 0 : index
    %c0_3 = arith.constant 0 : index
    %4 = vector.load %arg3[%c0_2, %c0_3] : memref<128x128xf32, #tpu.memory_space<vmem>>, vector<128x128xf32>
    %cst = arith.constant dense<0.000000e+00> : vector<8x128xf32>
    %5 = tpu.matmul %3, %4, %cst {dimension_numbers = #tpu.dot_dimension_numbers<[1], [1], [0], [0], [0, 0, 1, 0], [], []>} : vector<8x128xf32>, vector<128x128xf32>, vector<8x128xf32> -> vector<8x128xf32>
    %c0_4 = arith.constant 0 : index
    %c0_5 = arith.constant 0 : index
    %6 = vector.load %arg4[%c0_4, %c0_5] : memref<8x128xf32, #tpu.memory_space<vmem>>, vector<1x128xf32>
    %7 = vector.broadcast %6 : vector<1x128xf32> to vector<8x128xf32>
    %8 = arith.mulf %5, %7 : vector<8x128xf32>
    %c1 = arith.constant 1 : index
    %c0_6 = arith.constant 0 : index
    %9 = vector.load %arg4[%c1, %c0_6] : memref<8x128xf32, #tpu.memory_space<vmem>>, vector<1x128xf32>
    %10 = vector.broadcast %9 : vector<1x128xf32> to vector<8x128xf32>
    %11 = arith.addf %8, %10 : vector<8x128xf32>
    %c0_7 = arith.constant 0 : index
    %c0_8 = arith.constant 0 : index
    %12 = vector.load %arg6[%c0_7, %c0_8] : memref<8x1xf32, #tpu.memory_space<vmem>>, vector<8x1xf32>
    %cst_9 = arith.constant dense<0xFF800000> : vector<8xf32>
    %13 = vector.multi_reduction <maximumf>, %11, %cst_9 [1] : vector<8x128xf32> to vector<8xf32>
    %14 = vector.shape_cast %13 : vector<8xf32> to vector<8x1xf32>
    %15 = arith.maximumf %12, %14 : vector<8x1xf32>
    %c0_10 = arith.constant 0 : index
    %c0_11 = arith.constant 0 : index
    %16 = vector.load %arg7[%c0_10, %c0_11] : memref<8x1xf32, #tpu.memory_space<vmem>>, vector<8x1xf32>
    %17 = arith.subf %12, %15 : vector<8x1xf32>
    %18 = math.exp %17 : vector<8x1xf32>
    %19 = arith.mulf %16, %18 : vector<8x1xf32>
    %20 = vector.broadcast %15 : vector<8x1xf32> to vector<8x128xf32>
    %21 = arith.subf %11, %20 : vector<8x128xf32>
    %22 = math.exp %21 : vector<8x128xf32>
    %cst_12 = arith.constant dense<0.000000e+00> : vector<8xf32>
    %23 = vector.multi_reduction <add>, %22, %cst_12 [1] : vector<8x128xf32> to vector<8xf32>
    %24 = vector.shape_cast %23 : vector<8xf32> to vector<8x1xf32>
    %25 = arith.addf %19, %24 : vector<8x1xf32>
    %c0_13 = arith.constant 0 : index
    %c0_14 = arith.constant 0 : index
    %26 = vector.load %arg7[%c0_13, %c0_14] : memref<8x1xf32, #tpu.memory_space<vmem>>, vector<8x1xf32>
    tpu.vector_store %arg7[%c0_13, %c0_14], %25 {strides = array<i32>} : memref<8x1xf32, #tpu.memory_space<vmem>>, vector<8x1xf32>,
    %c0_15 = arith.constant 0 : index
    %c0_16 = arith.constant 0 : index
    %27 = vector.load %arg6[%c0_15, %c0_16] : memref<8x1xf32, #tpu.memory_space<vmem>>, vector<8x1xf32>
    tpu.vector_store %arg6[%c0_15, %c0_16], %15 {strides = array<i32>} : memref<8x1xf32, #tpu.memory_space<vmem>>, vector<8x1xf32>,
    %c0_i32_17 = arith.constant 0 : i32
    %28 = arith.cmpi eq, %arg1, %c0_i32_17 : i32
    %29 = arith.extui %28 : i1 to i32
    %c0_i32_18 = arith.constant 0 : i32
    %30 = arith.cmpi ne, %29, %c0_i32_18 : i32
    scf.if %30 {
      %c0_19 = arith.constant 0 : index
      %c0_20 = arith.constant 0 : index
      %31 = vector.load %arg6[%c0_19, %c0_20] : memref<8x1xf32, #tpu.memory_space<vmem>>, vector<8x1xf32>
      %c0_21 = arith.constant 0 : index
      %c0_22 = arith.constant 0 : index
      %32 = vector.load %arg7[%c0_21, %c0_22] : memref<8x1xf32, #tpu.memory_space<vmem>>, vector<8x1xf32>
      %33 = math.log %32 : vector<8x1xf32>
      %34 = arith.addf %31, %33 : vector<8x1xf32>
      %c0_23 = arith.constant 0 : index
      %c0_24 = arith.constant 0 : index
      %35 = vector.load %arg5[%c0_23, %c0_24] : memref<8x1xf32, #tpu.memory_space<vmem>>, vector<8x1xf32>
      tpu.vector_store %arg5[%c0_23, %c0_24], %34 {strides = array<i32>} : memref<8x1xf32, #tpu.memory_space<vmem>>, vector<8x1xf32>,
    } else {
    }
    return
  }
  func.func @transform_0(%arg0: i32, %arg1: i32) -> (i32, i32) {
    %c0_i32 = arith.constant 0 : i32
    %c0_i32_0 = arith.constant 0 : i32
    return %arg0, %c0_i32 : i32, i32
  }
  func.func @transform_1(%arg0: i32, %arg1: i32) -> (i32, i32) {
    %c0_i32 = arith.constant 0 : i32
    %c0_i32_0 = arith.constant 0 : i32
    return %arg1, %c0_i32 : i32, i32
  }
  func.func @transform_2(%arg0: i32, %arg1: i32) -> (i32, i32) {
    %c0_i32 = arith.constant 0 : i32
    %c0_i32_0 = arith.constant 0 : i32
    return %c0_i32, %arg1 : i32, i32
  }
  func.func @transform_3(%arg0: i32, %arg1: i32) -> (i32, i32) {
    %c0_i32 = arith.constant 0 : i32
    %c0_i32_0 = arith.constant 0 : i32
    return %arg0, %c0_i32 : i32, i32
  }
}

</mosaic_0001>

<llo_original>
// kernel: tpu_custom_call.1
$region0: #{tpu_custom_call.1}
  #allocation0 [shape = 'u32[]', space=smem, size = 0x4, offset = 0x4, fixed_abs, tag = 'smem constant byte address 0x4 - core index']
  #allocation1 [shape = 'u32[72,128]{1,0:T(1,128)}', space=vmem, size = 0x9000, scoped, tag = 'internal scratch']
  #allocation2 [shape = 'f32[8,1]{1,0:T(8,128)}', space=vmem, size = 0x1000, scoped, tag = 'scratch operand']
  #allocation3 [shape = 'f32[8,1]{1,0:T(8,128)}', space=vmem, size = 0x1000, scoped, tag = 'scratch operand']
  %s0 = inlined_call_operand.hbm [shape: f32[8,128], index: 0, kind: input, shape index: {}]
  %s1 = inlined_call_operand.hbm [shape: f32[128,128], index: 1, kind: input, shape index: {}]
  %s2 = inlined_call_operand.hbm [shape: f32[8,128], index: 2, kind: input, shape index: {}]
  %s3 = inlined_call_operand.vmem [shape: f32[8,1], index: 3, kind: output, shape index: {}]
  %s4 = sld [smem:[#allocation0]]
  $region42: #{tpu_custom_call.1} parent=0
    _
  %s6 = ssub.s32 1, %s4
  %s7 = scalar_select 0, %s6, %s4
  $region1: #{tpu_custom_call.1} parent=0
    #allocation4 [shape = 'u8[4096]{0}', space=vmem, size = 0x1000, scoped, tag = 'input window, operand 0, single buffered']
    #allocation5 [shape = 's32[1]{0}', space=sflag, size = 0x4, scoped, tag = 'scoped memory for tpu_custom_call.1']
    #allocation6 [shape = 'u8[65536]{0}', space=vmem, size = 0x10000, scoped, tag = 'input window, operand 1, single buffered']
    #allocation7 [shape = 's32[1]{0}', space=sflag, size = 0x4, scoped, tag = 'scoped memory for tpu_custom_call.1']
    #allocation8 [shape = 'u8[4096]{0}', space=vmem, size = 0x1000, scoped, tag = 'input window, operand 2, single buffered']
    %8 = vsyncpa [#allocation5], 0
    %9 = vsyncpa [#allocation7], 0
    // Predicated region
    $region2: #{tpu_custom_call.1} parent=1 // pred_check
      _
    $region3: #{tpu_custom_call.1} parent=1 // pred_check_branch
      %11 = sbr.rel (0) target = $region5
    $region4: #{tpu_custom_call.1} parent=1 // pred_region
      %13 = vsyncadd [#allocation5], 0
      %s15 = sshll.u32 %s0, 4
      %s16 = int_to_ptr.hbm [resolvable:$true] %s15
      %s17 = sshll.u32 [#allocation4], 4
      %s18 = int_to_ptr.vmem [resolvable:$true] %s17
      %20 = dma.hbm_to_vmem [thread:$0]  %s16, 128, %s18, [#allocation5]
    $region5: #{tpu_custom_call.1} parent=1 // pred_fallthru
      _
    // Predicated region
    $region6: #{tpu_custom_call.1} parent=1 // pred_check
      _
    $region7: #{tpu_custom_call.1} parent=1 // pred_check_branch
      %22 = sbr.rel (0) target = $region9
    $region8: #{tpu_custom_call.1} parent=1 // pred_region
      %24 = vsyncadd [#allocation7], 0
      %s25 = sshll.u32 %s1, 4
      %s26 = int_to_ptr.hbm [resolvable:$true] %s25
      %s27 = sshll.u32 [#allocation6], 4
      %s28 = int_to_ptr.vmem [resolvable:$true] %s27
      %33 = dma.hbm_to_vmem [thread:$0]  %s26, 2048, %s28, [#allocation7], 128, 128, 8
    $region9: #{tpu_custom_call.1} parent=1 // pred_fallthru
      _
    // Predicated region
    $region10: #{tpu_custom_call.1} parent=1 // pred_check
      _
    $region11: #{tpu_custom_call.1} parent=1 // pred_check_branch
      %35 = sbr.rel (0) target = $region13
    $region12: #{tpu_custom_call.1} parent=1 // pred_region
      %37 = vsyncadd [#allocation7], 0
      %s39 = sshll.u32 %s2, 4
      %s40 = int_to_ptr.hbm [resolvable:$true] %s39
      %s41 = sshll.u32 [#allocation8], 4
      %s42 = int_to_ptr.vmem [resolvable:$true] %s41
      %44 = dma.hbm_to_vmem [thread:$0]  %s40, 128, %s42, [#allocation7]
    $region13: #{tpu_custom_call.1} parent=1 // pred_fallthru
      _
    // Predicated region
    $region14: #{tpu_custom_call.1} parent=1 // pred_check
      _
    $region15: #{tpu_custom_call.1} parent=1 // pred_check_branch
      %46 = sbr.rel (0) target = $region17
    $region16: #{tpu_custom_call.1} parent=1 // pred_region
      %48 = dma.done [#allocation5], 128
    $region17: #{tpu_custom_call.1} parent=1 // pred_fallthru
      _
    // Predicated region
    $region18: #{tpu_custom_call.1} parent=1 // pred_check
      _
    $region19: #{tpu_custom_call.1} parent=1 // pred_check_branch
      %50 = sbr.rel (0) target = $region21
    $region20: #{tpu_custom_call.1} parent=1 // pred_region
      %52 = dma.done [#allocation7], 2048
    $region21: #{tpu_custom_call.1} parent=1 // pred_fallthru
      _
    // Predicated region
    $region22: #{tpu_custom_call.1} parent=1 // pred_check
      _
    $region23: #{tpu_custom_call.1} parent=1 // pred_check_branch
      %54 = sbr.rel (0) target = $region25
    $region24: #{tpu_custom_call.1} parent=1 // pred_region
      %56 = dma.done [#allocation7], 128
    $region25: #{tpu_custom_call.1} parent=1 // pred_fallthru
      _
    %p57 = scmp.eq.s32.totalorder 0, 0
    // Predicated region
    $region26: #{tpu_custom_call.1} parent=1 // pred_check
      %p58 = pneg %p57
    $region27: #{tpu_custom_call.1} parent=1 // pred_check_branch
      %60 = sbr.rel (%p58) target = $region29
    $region28: #{tpu_custom_call.1} parent=1 // pred_region
      %vm61 = vcmask 7168
      %62 = vst.msk [vmem:[#allocation2] sm:$0xff] %vm61, -inf
      %63 = vst.msk [vmem:[#allocation3] sm:$0xff] %vm61, 0.0
    $region29: #{tpu_custom_call.1} parent=1 // pred_fallthru
      _
    %v64 = vld [vmem:[#allocation4] sm:$0xff]
    %v65 = vld [vmem:[#allocation6] sm:$0xff]
    %v66 = vld [vmem:[#allocation6 + $0x8] sm:$0xff]
    %v67 = vld [vmem:[#allocation6 + $0x10] sm:$0xff]
    %v68 = vld [vmem:[#allocation6 + $0x18] sm:$0xff]
    %v69 = vld [vmem:[#allocation6 + $0x20] sm:$0xff]
    %v70 = vld [vmem:[#allocation6 + $0x28] sm:$0xff]
    %v71 = vld [vmem:[#allocation6 + $0x30] sm:$0xff]
    %v72 = vld [vmem:[#allocation6 + $0x38] sm:$0xff]
    %v73 = vld [vmem:[#allocation6 + $0x40] sm:$0xff]
    %v74 = vld [vmem:[#allocation6 + $0x48] sm:$0xff]
    %v75 = vld [vmem:[#allocation6 + $0x50] sm:$0xff]
    %v76 = vld [vmem:[#allocation6 + $0x58] sm:$0xff]
    %v77 = vld [vmem:[#allocation6 + $0x60] sm:$0xff]
    %v78 = vld [vmem:[#allocation6 + $0x68] sm:$0xff]
    %v79 = vld [vmem:[#allocation6 + $0x70] sm:$0xff]
    %v80 = vld [vmem:[#allocation6 + $0x78] sm:$0xff]
    %81 = vmatpush.xpose.msra.mxu0 %v80
    %82 = vmatpush.xpose.msra.mxu0 %v79
    %83 = vmatpush.xpose.msra.mxu0 %v78
    %84 = vmatpush.xpose.msra.mxu0 %v77
    %85 = vmatpush.xpose.msra.mxu0 %v76
    %86 = vmatpush.xpose.msra.mxu0 %v75
    %87 = vmatpush.xpose.msra.mxu0 %v74
    %88 = vmatpush.xpose.msra.mxu0 %v73
    %89 = vmatpush.xpose.msra.mxu0 %v72
    %90 = vmatpush.xpose.msra.mxu0 %v71
    %91 = vmatpush.xpose.msra.mxu0 %v70
    %92 = vmatpush.xpose.msra.mxu0 %v69
    %93 = vmatpush.xpose.msra.mxu0 %v68
    %94 = vmatpush.xpose.msra.mxu0 %v67
    %95 = vmatpush.xpose.msra.mxu0 %v66
    %96 = vmatpush.xpose.msra.mxu0 %v65
    %97 = vmatmul.f32.gmra.mxu0 %v64
    %v98 = vpop.f32.mrf.mxu0
    %v99 = vadd.f32 0.0, %v98
    %100 = vdwg.mxu0
    %v101 = vld [vmem:[#allocation8] sm:$0x1]
    %v102 = vperm.slane %v101, 0
    %v103 = vmul.f32 %v99, %v102
    %v104 = vld [vmem:[#allocation8 + $0x1] sm:$0x1]
    %v105 = vperm.slane %v104, 0
    %v106 = vadd.f32 %v103, %v105
    %v107 = vld [vmem:[#allocation2] sm:$0xff]
    %108 = vmax.xlane.f32.xlu0 %v106
    %v109 = vpop.xlane.xlu0 %108
    %v110 = vmax.f32 %v107, %v109
    %v111 = vld [vmem:[#allocation3] sm:$0xff]
    %v112 = vsub.f32 %v107, %v110
    %v113 = vmul.f32 %v112, 1.442695
    %v114 = vpow.pop %v113
    %v115 = vmul.f32 %v111, %v114
    %117 = vset.pattern.permute.xlu0 0
    %118 = vperm.xlu0 %117, %v110
    %v119 = vpop.permute.xlu0 %118
    %v121 = vsub.f32 %v106, %v119
    %v122 = vmul.f32 %v121, 1.442695
    %v123 = vpow.pop %v122
    %124 = vadd.xlane.f32.xlu0 %v123
    %v125 = vpop.xlane.xlu0 %124
    %v126 = vadd.f32 %v115, %v125
    %vm127 = vcmask 7168
    %128 = vst.msk [vmem:[#allocation3] sm:$0xff] %vm127, %v126
    %129 = vst.msk [vmem:[#allocation2] sm:$0xff] %vm127, %v110
    // Predicated region
    $region30: #{tpu_custom_call.1} parent=1 // pred_check
      %p130 = pneg %p57
    $region31: #{tpu_custom_call.1} parent=1 // pred_check_branch
      %132 = sbr.rel (%p130) target = $region33
    $region32: #{tpu_custom_call.1} parent=1 // pred_region
      %v133 = vld [vmem:[#allocation2] sm:$0xff]
      %v134 = vld [vmem:[#allocation3] sm:$0xff]
      %v135 = vlog2.pop %v134
      %v136 = vmul.f32 %v135, 0.6931472
      %v137 = vadd.f32 %v133, %v136
      %138 = vst.msk [vmem:[%s3] sm:$0xff] %vm127, %v137
    $region33: #{tpu_custom_call.1} parent=1 // pred_fallthru
      _
    // Predicated region
    $region34: #{tpu_custom_call.1} parent=1 // pred_check
      _
    $region35: #{tpu_custom_call.1} parent=1 // pred_check_branch
      %140 = sbr.rel (0) target = $region37
    $region36: #{tpu_custom_call.1} parent=1 // pred_region
      _
    $region37: #{tpu_custom_call.1} parent=1 // pred_fallthru
      _
    // Predicated region
    $region38: #{tpu_custom_call.1} parent=1 // pred_check
      _
    $region39: #{tpu_custom_call.1} parent=1 // pred_check_branch
      %142 = sbr.rel (0) target = $region41
    $region40: #{tpu_custom_call.1} parent=1 // pred_region
      _
    $region41: #{tpu_custom_call.1} parent=1 // pred_fallthru
      _
    %143 = vsyncpa [#allocation5], 1
    %144 = vsyncpa [#allocation7], 1

</llo_original>
